<compile_context>
chip_gen: v6e
topology: v6e:2x2x1
jax: 0.10.0
libtpu: 0.0.40
codegen_flags: <defaults>
</compile_context>

<pallas_src>
import math

import jax
import jax.numpy as jnp
from jax.experimental import pallas as pl
from jax.experimental.pallas import tpu as pltpu


def _round_up(x, m):
    return ((x + m - 1) // m) * m


def _nalu_kernel(eps, n_pad, nk, bf16_log):
    """Build the kernel body. nk = number of K (D_in) tiles."""

    def partial_products(x, gw):
        # [gate_pre | xw] partial sums: one fused MXU launch against [G | W].
        z = jnp.dot(x, gw, preferred_element_type=jnp.float32)
        # Multiplicative path: log(|X| + eps) @ W (reusing the W half of gw).
        if bf16_log:
            # bf16 EUP path (v6e/v7x). TODO(synk): optionally keep the
            # log-domain matmul in f32 for accuracy (errors are amplified
            # multiplicatively by exp()).
            log_x = jnp.log(jnp.abs(x) + jnp.asarray(eps, x.dtype))
        else:
            log_x = jnp.log(jnp.abs(x.astype(jnp.float32)) + jnp.float32(eps))
        lw = jnp.dot(log_x.astype(gw.dtype), gw[:, n_pad:],
                     preferred_element_type=jnp.float32)
        return z, lw

    def combine(z, lw, o_ref):
        gate = jax.nn.sigmoid(z[:, :n_pad])
        xw = z[:, n_pad:]
        mul_div = jnp.exp(lw)
        # gate*xw + (1-gate)*mul_div, with one fewer full-tile multiply.
        o_ref[...] = (mul_div + gate * (xw - mul_div)).astype(o_ref.dtype)

    if nk == 1:
        def kernel(x_ref, gw_ref, o_ref):
            z, lw = partial_products(x_ref[...], gw_ref[...])
            combine(z, lw, o_ref)
    else:
        def kernel(x_ref, gw_ref, o_ref, z_acc, lw_acc):
            k = pl.program_id(1)

            @pl.when(k == 0)
            def _init():
                z_acc[...] = jnp.zeros_like(z_acc)
                lw_acc[...] = jnp.zeros_like(lw_acc)

            z, lw = partial_products(x_ref[...], gw_ref[...])
            z_acc[...] += z
            lw_acc[...] += lw

            @pl.when(k == pl.num_programs(1) - 1)
            def _finalize():
                combine(z_acc[...], lw_acc[...], o_ref)

    return kernel


def nalu_forward(x, G, W_hat, M_hat, *, eps=1e-8, tile_b=512, max_tile_k=2048):
    """Pallas NALU forward. x: (B, D_in); G/W_hat/M_hat: (D_in, D_out)."""
    B, D_in = x.shape
    D_out = G.shape[1]
    n_pad = _round_up(D_out, 128)                 # lane-dense output width

    x_isz = jnp.dtype(x.dtype).itemsize
    w_isz = jnp.dtype(G.dtype).itemsize
    bf16_log = jnp.dtype(x.dtype) == jnp.dtype(jnp.bfloat16)

    # --- NAC weight, hoisted out of the grid loop (grid-invariant) ----------
    W = (jnp.tanh(W_hat.astype(jnp.float32))
         * jax.nn.sigmoid(M_hat.astype(jnp.float32))).astype(G.dtype)

    # --- K (contraction) tiling ----------------------------------------------
    if D_in <= max_tile_k:
        tile_k = D_in
    else:
        tile_k = max(128, (min(max_tile_k, 2048) // 128) * 128)
    D_in_pad = _round_up(D_in, tile_k)
    nk = D_in_pad // tile_k

    # Fused, lane-padded (and K-padded) weight block:
    #   columns [0:D_out] = G, columns [n_pad:n_pad+D_out] = W.
    GW = jnp.zeros((D_in_pad, 2 * n_pad), dtype=G.dtype)
    GW = GW.at[:D_in, :D_out].set(G)
    GW = GW.at[:D_in, n_pad:n_pad + D_out].set(W)

    # --- Batch tiling ---------------------------------------------------------
    # Sub-32-bit dtypes pack rows along sublanes: use 16/32-row multiples.
    row_mult = {4: 8, 2: 16, 1: 32}.get(x_isz, 8)
    tile_b = min(int(tile_b), _round_up(B, row_mult))
    if B > row_mult:
        # >= 2 batch programs so both v7x TensorCores get work (megacore).
        tile_b = min(tile_b, _round_up(-(-B // 2), row_mult))
    tile_b = max(row_mult, _round_up(tile_b, row_mult))

    # Shrink tile_b until the per-step working set fits an explicit VMEM
    # budget (v5e scoped default is 16 MiB; v7x physical VMEM is 64 MiB).
    def vmem_estimate(tb):
        x_buf = 2 * tb * tile_k * x_isz                       # double-buffered X
        gw_buf = (1 if nk == 1 else 2) * tile_k * 2 * n_pad * w_isz
        out_buf = 2 * tb * n_pad * x_isz
        acc = 0 if nk == 1 else tb * 3 * n_pad * 4            # f32 accumulators
        tmp = tb * tile_k * 4 + 4 * tb * n_pad * 4            # log_x / z / temps
        return x_buf + gw_buf + out_buf + acc + tmp

    budget = 24 * 1024 * 1024
    while tile_b > row_mult and vmem_estimate(tile_b) > budget:
        tile_b = max(row_mult, _round_up(tile_b // 2, row_mult))
    vmem_limit = int(max(32 * 1024 * 1024,
                         min(vmem_estimate(tile_b) * 5 // 4,
                             120 * 1024 * 1024)))

    B_pad = _round_up(B, tile_b)
    if B_pad != B or D_in_pad != D_in:
        x = jnp.pad(x, ((0, B_pad - B), (0, D_in_pad - D_in)))
    nb = B_pad // tile_b

    cost = pl.CostEstimate(
        flops=2 * B_pad * D_in_pad * 3 * n_pad,
        transcendentals=B_pad * (D_in_pad + 2 * n_pad),     # log + sigmoid + exp
        bytes_accessed=(B_pad * D_in_pad * x_isz            # X read once
                        + nb * D_in_pad * 2 * n_pad * w_isz  # GW per batch tile
                        + B_pad * n_pad * x_isz),            # output
    )

    scratch = [] if nk == 1 else [
        pltpu.VMEM((tile_b, 2 * n_pad), jnp.float32),
        pltpu.VMEM((tile_b, n_pad), jnp.float32),
    ]

    def make_call(gw_spec):
        return pl.pallas_call(
            _nalu_kernel(eps, n_pad, nk, bf16_log),
            out_shape=jax.ShapeDtypeStruct((B_pad, n_pad), x.dtype),
            grid_spec=pltpu.PrefetchScalarGridSpec(
                num_scalar_prefetch=0,
                grid=(nb, nk),
                in_specs=[
                    pl.BlockSpec((tile_b, tile_k), lambda i, k: (i, k)),  # X
                    gw_spec,                                              # [G|W]
                ],
                out_specs=pl.BlockSpec((tile_b, n_pad), lambda i, k: (i, 0)),
                scratch_shapes=scratch,
            ),
            compiler_params=pltpu.CompilerParams(
                dimension_semantics=("parallel", "arbitrary"),
                vmem_limit_bytes=vmem_limit,
            ),
            cost_estimate=cost,
        )

    gw_default = pl.BlockSpec((tile_k, 2 * n_pad), lambda i, k: (k, 0))
    if nk == 1:
        # Grid-invariant weight block: single-buffer it (saves one full copy
        # of [G | W] in VMEM). Fall back to default buffering if unsupported.
        try:
            gw_single = pl.BlockSpec((tile_k, 2 * n_pad), lambda i, k: (0, 0),
                                     pipeline_mode=pl.Buffered(1))
            out = make_call(gw_single)(x, GW)
        except Exception:
            out = make_call(gw_default)(x, GW)
    else:
        out = make_call(gw_default)(x, GW)

    # TODO(synk): for very large D_out also tile the output (N) dimension; the
    # current kernel assumes the [G | W] block fits in VMEM. For D_out <= 64 in
    # an MXU-bound regime, G and W could further be packed into a single
    # 128-lane tile to halve the fused matmul width.
    return out[:B, :D_out]


def nalu_reference(x, G, W_hat, M_hat, eps=1e-8):
    W = jnp.tanh(W_hat) * jax.nn.sigmoid(M_hat)
    gate = jax.nn.sigmoid(x @ G)
    add_sub = (x @ W) * gate
    mul_div = jnp.exp(jnp.log(jnp.abs(x) + eps) @ W) * (1.0 - gate)
    return add_sub + mul_div


if __name__ == "__main__":
    eps = 1e-8
    root = jax.random.PRNGKey(0)

    def make_params(key, d_in, d_out):
        k_g, k_w, k_m = jax.random.split(key, 3)
        # kaiming_uniform_(a=sqrt(5)) -> U(-1/sqrt(fan_in), 1/sqrt(fan_in));
        # PyTorch fan_in of a (d_in, d_out) tensor is dim 1 for G.
        bound_g = 1.0 / math.sqrt(d_out)
        G = jax.random.uniform(k_g, (d_in, d_out), jnp.float32, -bound_g, bound_g)
        bound_w = 1.0 / math.sqrt(d_in)
        W_hat = jax.random.uniform(k_w, (d_in, d_out), jnp.float32, -bound_w, bound_w)
        M_hat = jax.random.uniform(k_m, (d_in, d_out), jnp.float32, -bound_w, bound_w)
        return G, W_hat, M_hat

    def check(case_key, batch, d_in, d_out, dtype, atol, rtol, **kw):
        k_p, k_x = jax.random.split(case_key)
        G, W_hat, M_hat = make_params(k_p, d_in, d_out)
        x = jax.random.normal(k_x, (batch, d_in), jnp.float32)
        x, G, W_hat, M_hat = [a.astype(dtype) for a in (x, G, W_hat, M_hat)]
        out = jax.block_until_ready(nalu_forward(x, G, W_hat, M_hat, eps=eps, **kw))
        ref = nalu_reference(x.astype(jnp.float32), G.astype(jnp.float32),
                             W_hat.astype(jnp.float32), M_hat.astype(jnp.float32),
                             eps=eps)
        assert out.shape == (batch, d_out), out.shape
        err = jnp.max(jnp.abs(out.astype(jnp.float32) - ref))
        assert jnp.allclose(out.astype(jnp.float32), ref, atol=atol, rtol=rtol), \
            f"mismatch vs reference (max abs err {err})"

    k1, k2, k3, k4 = jax.random.split(root, 4)
    # 1) Tiny single-tile f32 case (module-sized shapes).
    check(k1, 8, 32, 16, jnp.float32, 1e-5, 1e-5)
    # 2) Batch/lane padding + >=2 batch programs (megacore path), f32.
    check(k2, 40, 160, 16, jnp.float32, 1e-5, 1e-5)
    # 3) K-split path (trailing "arbitrary" axis + f32 VMEM accumulators).
    check(k3, 16, 256, 16, jnp.float32, 1e-5, 1e-5, max_tile_k=128)
    # 4) bf16 path (bf16 log / bf16 MXU operands) — loose tolerance vs f32 ref.
    check(k4, 24, 64, 16, jnp.bfloat16, 1e-1, 1e-1)

    print("KERNEL_OK")
</pallas_src>

<mosaic_0001>
module attributes {stable_mosaic.version = 11 : i64} {
  func.func @kernel(%arg0: i32, %arg1: i32, %arg2: memref<8x32xf32, #tpu.memory_space<vmem>>, %arg3: memref<32x256xf32, #tpu.memory_space<vmem>>, %arg4: memref<8x128xf32, #tpu.memory_space<vmem>>) attributes {dimension_semantics = [#tpu.dimension_semantics<parallel>, #tpu.dimension_semantics<arbitrary>], iteration_bounds = array<i64: 1, 1>, scalar_prefetch = 0 : i64, scratch_operands = 0 : i64, tpu.core_type = #tpu.core_type<tc>, window_params = [{transform_indices = @transform_0, window_bounds = array<i64: 8, 32>}, {pipeline_mode = #tpu.pipeline_mode<synchronous>, transform_indices = @transform_1, window_bounds = array<i64: 32, 256>}, {transform_indices = @transform_2, window_bounds = array<i64: 8, 128>}]} {
    %c0 = arith.constant 0 : index
    %c0_0 = arith.constant 0 : index
    %0 = vector.load %arg2[%c0, %c0_0] : memref<8x32xf32, #tpu.memory_space<vmem>>, vector<8x32xf32>
    %c0_1 = arith.constant 0 : index
    %c0_2 = arith.constant 0 : index
    %1 = vector.load %arg3[%c0_1, %c0_2] : memref<32x256xf32, #tpu.memory_space<vmem>>, vector<32x256xf32>
    %cst = arith.constant dense<0.000000e+00> : vector<8x256xf32>
    %2 = tpu.matmul %0, %1, %cst {dimension_numbers = #tpu.dot_dimension_numbers<[1], [0], [0], [1], [0, 0, 1, 1], [], []>} : vector<8x32xf32>, vector<32x256xf32>, vector<8x256xf32> -> vector<8x256xf32>
    %3 = math.absf %0 : vector<8x32xf32>
    %cst_3 = arith.constant 9.99999993E-9 : f32
    %4 = vector.broadcast %cst_3 : f32 to vector<8x32xf32>
    %5 = arith.addf %3, %4 : vector<8x32xf32>
    %6 = math.log %5 : vector<8x32xf32>
    %7 = vector.extract_strided_slice %1 {offsets = [0, 128], sizes = [32, 128], strides = [1, 1]} : vector<32x256xf32> to vector<32x128xf32>
    %cst_4 = arith.constant dense<0.000000e+00> : vector<8x128xf32>
    %8 = tpu.matmul %6, %7, %cst_4 {dimension_numbers = #tpu.dot_dimension_numbers<[1], [0], [0], [1], [0, 0, 1, 1], [], []>} : vector<8x32xf32>, vector<32x128xf32>, vector<8x128xf32> -> vector<8x128xf32>
    %9 = vector.extract_strided_slice %2 {offsets = [0, 0], sizes = [8, 128], strides = [1, 1]} : vector<8x256xf32> to vector<8x128xf32>
    %10 = arith.negf %9 : vector<8x128xf32>
    %11 = math.exp %10 : vector<8x128xf32>
    %cst_5 = arith.constant 1.000000e+00 : f32
    %12 = vector.broadcast %cst_5 : f32 to vector<8x128xf32>
    %13 = arith.addf %12, %11 : vector<8x128xf32>
    %14 = arith.divf %12, %13 : vector<8x128xf32>
    %15 = vector.extract_strided_slice %2 {offsets = [0, 128], sizes = [8, 128], strides = [1, 1]} : vector<8x256xf32> to vector<8x128xf32>
    %16 = math.exp %8 : vector<8x128xf32>
    %17 = arith.subf %15, %16 : vector<8x128xf32>
    %18 = arith.mulf %14, %17 : vector<8x128xf32>
    %19 = arith.addf %16, %18 : vector<8x128xf32>
    %c0_6 = arith.constant 0 : index
    %c0_7 = arith.constant 0 : index
    %20 = vector.load %arg4[%c0_6, %c0_7] : memref<8x128xf32, #tpu.memory_space<vmem>>, vector<8x128xf32>
    tpu.vector_store %arg4[%c0_6, %c0_7], %19 {strides = array<i32>} : memref<8x128xf32, #tpu.memory_space<vmem>>, vector<8x128xf32>,
    return
  }
  func.func @transform_0(%arg0: i32, %arg1: i32) -> (i32, i32) {
    %c0_i32 = arith.constant 0 : i32
    return %arg0, %arg1 : i32, i32
  }
  func.func @transform_1(%arg0: i32, %arg1: i32) -> (i32, i32) {
    %c0_i32 = arith.constant 0 : i32
    %c0_i32_0 = arith.constant 0 : i32
    %c0_i32_1 = arith.constant 0 : i32
    return %c0_i32, %c0_i32_0 : i32, i32
  }
  func.func @transform_2(%arg0: i32, %arg1: i32) -> (i32, i32) {
    %c0_i32 = arith.constant 0 : i32
    %c0_i32_0 = arith.constant 0 : i32
    return %arg0, %c0_i32 : i32, i32
  }
}

module attributes {stable_mosaic.version = 11 : i64} {
  func.func @kernel(%arg0: i32, %arg1: i32, %arg2: memref<8x32xf32, #tpu.memory_space<vmem>>, %arg3: memref<32x256xf32, #tpu.memory_space<vmem>>, %arg4: memref<8x128xf32, #tpu.memory_space<vmem>>) attributes {dimension_semantics = [#tpu.dimension_semantics<parallel>, #tpu.dimension_semantics<arbitrary>], iteration_bounds = array<i64: 1, 1>, scalar_prefetch = 0 : i64, scratch_operands = 0 : i64, tpu.core_type = #tpu.core_type<tc>, window_params = [{transform_indices = @transform_0, window_bounds = array<i64: 8, 32>}, {transform_indices = @transform_1, window_bounds = array<i64: 32, 256>}, {transform_indices = @transform_2, window_bounds = array<i64: 8, 128>}]} {
    %c0 = arith.constant 0 : index
    %c0_0 = arith.constant 0 : index
    %0 = vector.load %arg2[%c0, %c0_0] : memref<8x32xf32, #tpu.memory_space<vmem>>, vector<8x32xf32>
    %c0_1 = arith.constant 0 : index
    %c0_2 = arith.constant 0 : index
    %1 = vector.load %arg3[%c0_1, %c0_2] : memref<32x256xf32, #tpu.memory_space<vmem>>, vector<32x256xf32>
    %cst = arith.constant dense<0.000000e+00> : vector<8x256xf32>
    %2 = tpu.matmul %0, %1, %cst {dimension_numbers = #tpu.dot_dimension_numbers<[1], [0], [0], [1], [0, 0, 1, 1], [], []>} : vector<8x32xf32>, vector<32x256xf32>, vector<8x256xf32> -> vector<8x256xf32>
    %3 = math.absf %0 : vector<8x32xf32>
    %cst_3 = arith.constant 9.99999993E-9 : f32
    %4 = vector.broadcast %cst_3 : f32 to vector<8x32xf32>
    %5 = arith.addf %3, %4 : vector<8x32xf32>
    %6 = math.log %5 : vector<8x32xf32>
    %7 = vector.extract_strided_slice %1 {offsets = [0, 128], sizes = [32, 128], strides = [1, 1]} : vector<32x256xf32> to vector<32x128xf32>
    %cst_4 = arith.constant dense<0.000000e+00> : vector<8x128xf32>
    %8 = tpu.matmul %6, %7, %cst_4 {dimension_numbers = #tpu.dot_dimension_numbers<[1], [0], [0], [1], [0, 0, 1, 1], [], []>} : vector<8x32xf32>, vector<32x128xf32>, vector<8x128xf32> -> vector<8x128xf32>
    %9 = vector.extract_strided_slice %2 {offsets = [0, 0], sizes = [8, 128], strides = [1, 1]} : vector<8x256xf32> to vector<8x128xf32>
    %10 = arith.negf %9 : vector<8x128xf32>
    %11 = math.exp %10 : vector<8x128xf32>
    %cst_5 = arith.constant 1.000000e+00 : f32
    %12 = vector.broadcast %cst_5 : f32 to vector<8x128xf32>
    %13 = arith.addf %12, %11 : vector<8x128xf32>
    %14 = arith.divf %12, %13 : vector<8x128xf32>
    %15 = vector.extract_strided_slice %2 {offsets = [0, 128], sizes = [8, 128], strides = [1, 1]} : vector<8x256xf32> to vector<8x128xf32>
    %16 = math.exp %8 : vector<8x128xf32>
    %17 = arith.subf %15, %16 : vector<8x128xf32>
    %18 = arith.mulf %14, %17 : vector<8x128xf32>
    %19 = arith.addf %16, %18 : vector<8x128xf32>
    %c0_6 = arith.constant 0 : index
    %c0_7 = arith.constant 0 : index
    %20 = vector.load %arg4[%c0_6, %c0_7] : memref<8x128xf32, #tpu.memory_space<vmem>>, vector<8x128xf32>
    tpu.vector_store %arg4[%c0_6, %c0_7], %19 {strides = array<i32>} : memref<8x128xf32, #tpu.memory_space<vmem>>, vector<8x128xf32>,
    return
  }
  func.func @transform_0(%arg0: i32, %arg1: i32) -> (i32, i32) {
    %c0_i32 = arith.constant 0 : i32
    return %arg0, %arg1 : i32, i32
  }
  func.func @transform_1(%arg0: i32, %arg1: i32) -> (i32, i32) {
    %c0_i32 = arith.constant 0 : i32
    %c0_i32_0 = arith.constant 0 : i32
    return %arg1, %c0_i32 : i32, i32
  }
  func.func @transform_2(%arg0: i32, %arg1: i32) -> (i32, i32) {
    %c0_i32 = arith.constant 0 : i32
    %c0_i32_0 = arith.constant 0 : i32
    return %arg0, %c0_i32 : i32, i32
  }
}

</mosaic_0001>

<llo_original>
// kernel: tpu_custom_call.1
$region0: #{tpu_custom_call.1}
  #allocation0 [shape = 'u32[]', space=smem, size = 0x4, offset = 0x4, fixed_abs, tag = 'smem constant byte address 0x4 - core index']
  #allocation1 [shape = 'u32[144,128]{1,0:T(1,128)}', space=vmem, size = 0x12000, scoped, tag = 'internal scratch']
  %s0 = inlined_call_operand.hbm [shape: f32[8,32], index: 0, kind: input, shape index: {}]
  %s1 = inlined_call_operand.hbm [shape: f32[32,256], index: 1, kind: input, shape index: {}]
  %s2 = inlined_call_operand.hbm [shape: f32[8,128], index: 2, kind: output, shape index: {}]
  %s3 = sld [smem:[#allocation0]]
  $region26: #{tpu_custom_call.1} parent=0
    _
  %s5 = ssub.s32 1, %s3
  %s6 = scalar_select 0, %s5, %s3
  $region1: #{tpu_custom_call.1} parent=0
    #allocation2 [shape = 'u8[4096]{0}', space=vmem, size = 0x1000, scoped, tag = 'input window, operand 0, single buffered']
    #allocation3 [shape = 's32[1]{0}', space=sflag, size = 0x4, scoped, tag = 'scoped memory for tpu_custom_call.1']
    #allocation4 [shape = 's32[1]{0}', space=sflag, size = 0x4, scoped, tag = 'scoped memory for tpu_custom_call.1']
    #allocation5 [shape = 'u8[32768]{0}', space=vmem, size = 0x8000, scoped, tag = 'input window, operand 1, single buffered']
    #allocation6 [shape = 's32[1]{0}', space=sflag, size = 0x4, scoped, tag = 'scoped memory for tpu_custom_call.1']
    #allocation7 [shape = 'u8[4096]{0}', space=vmem, size = 0x1000, scoped, tag = 'output window, operand 0, single buffered']
    %7 = vsyncpa [#allocation3], 0
    %8 = vsyncpa [#allocation6], 0
    %9 = vsyncpa [#allocation4], 0
    // Predicated region
    $region2: #{tpu_custom_call.1} parent=1 // pred_check
      _
    $region3: #{tpu_custom_call.1} parent=1 // pred_check_branch
      %11 = sbr.rel (0) target = $region5
    $region4: #{tpu_custom_call.1} parent=1 // pred_region
      %s13 = ssub.s32 128, 128
      %14 = vsyncadd [#allocation3], %s13
      %s16 = sshll.u32 [#allocation2], 4
      %s17 = int_to_ptr.vmem [resolvable:$true] %s16
      %19 = dma.hbm_to_vmem [thread:$0]  %s0, 128, %s17, [#allocation3]
    $region5: #{tpu_custom_call.1} parent=1 // pred_fallthru
      _
    // Predicated region
    $region6: #{tpu_custom_call.1} parent=1 // pred_check
      _
    $region7: #{tpu_custom_call.1} parent=1 // pred_check_branch
      %21 = sbr.rel (0) target = $region9
    $region8: #{tpu_custom_call.1} parent=1 // pred_region
      %s23 = ssub.s32 1024, 1024
      %24 = vsyncadd [#allocation6], %s23
      %s25 = sshll.u32 [#allocation5], 4
      %s26 = int_to_ptr.vmem [resolvable:$true] %s25
      %31 = dma.hbm_to_vmem [thread:$0]  %s1, 1024, %s26, [#allocation6], 256, 256, 16
    $region9: #{tpu_custom_call.1} parent=1 // pred_fallthru
      _
    // Predicated region
    $region10: #{tpu_custom_call.1} parent=1 // pred_check
      _
    $region11: #{tpu_custom_call.1} parent=1 // pred_check_branch
      %33 = sbr.rel (0) target = $region13
    $region12: #{tpu_custom_call.1} parent=1 // pred_region
      %34 = dma.done [#allocation3], 128
    $region13: #{tpu_custom_call.1} parent=1 // pred_fallthru
      _
    // Predicated region
    $region14: #{tpu_custom_call.1} parent=1 // pred_check
      _
    $region15: #{tpu_custom_call.1} parent=1 // pred_check_branch
      %36 = sbr.rel (0) target = $region17
    $region16: #{tpu_custom_call.1} parent=1 // pred_region
      %37 = dma.done [#allocation6], 1024
    $region17: #{tpu_custom_call.1} parent=1 // pred_fallthru
      _
    %v38 = vld [vmem:[#allocation2] sm:$0xff]
    %v39 = vld [vmem:[#allocation5] sm:$0xff]
    %v40 = vld [vmem:[#allocation5 + $0x8] sm:$0xff]
    %v41 = vld [vmem:[#allocation5 + $0x10] sm:$0xff]
    %v42 = vld [vmem:[#allocation5 + $0x18] sm:$0xff]
    %v43 = vld [vmem:[#allocation5 + $0x20] sm:$0xff]
    %v44 = vld [vmem:[#allocation5 + $0x28] sm:$0xff]
    %v45 = vld [vmem:[#allocation5 + $0x30] sm:$0xff]
    %v46 = vld [vmem:[#allocation5 + $0x38] sm:$0xff]
    %vm47 = vcmask 261120
    %v49 = vsel %vm47, %v38, 0
    %51 = vmatprep.subr.mxu0 0.0
    %52 = vmatpush1.msra.mxu0 0.0
    %53 = vmatprep.subr.mxu0 0.0
    %54 = vmatpush1.msra.mxu0 0.0
    %55 = vmatprep.subr.mxu0 0.0
    %56 = vmatpush1.msra.mxu0 0.0
    %57 = vmatprep.subr.mxu0 0.0
    %58 = vmatpush1.msra.mxu0 0.0
    %59 = vmatprep.subr.mxu0 0.0
    %60 = vmatpush1.msra.mxu0 0.0
    %61 = vmatprep.subr.mxu0 0.0
    %62 = vmatpush1.msra.mxu0 0.0
    %63 = vmatprep.subr.mxu0 0.0
    %64 = vmatpush1.msra.mxu0 0.0
    %65 = vmatprep.subr.mxu0 0.0
    %66 = vmatpush1.msra.mxu0 0.0
    %67 = vmatprep.subr.mxu0 0.0
    %68 = vmatpush1.msra.mxu0 0.0
    %69 = vmatprep.subr.mxu0 0.0
    %70 = vmatpush1.msra.mxu0 0.0
    %71 = vmatprep.subr.mxu0 0.0
    %72 = vmatpush1.msra.mxu0 0.0
    %73 = vmatprep.subr.mxu0 0.0
    %74 = vmatpush1.msra.mxu0 0.0
    %75 = vmatprep.subr.mxu0 %v46
    %76 = vmatpush1.msra.mxu0 %v45
    %77 = vmatprep.subr.mxu0 %v44
    %78 = vmatpush1.msra.mxu0 %v43
    %79 = vmatprep.subr.mxu0 %v42
    %80 = vmatpush1.msra.mxu0 %v41
    %81 = vmatprep.subr.mxu0 %v40
    %82 = vmatpush1.msra.mxu0 %v39
    %83 = vmatprep.subr.mxu0 0.0
    %84 = vmatpush2.msra.mxu0 0.0
    %85 = vmatprep.subr.mxu0 0.0
    %86 = vmatpush2.msra.mxu0 0.0
    %87 = vmatprep.subr.mxu0 0.0
    %88 = vmatpush2.msra.mxu0 0.0
    %89 = vmatprep.subr.mxu0 0.0
    %90 = vmatpush2.msra.mxu0 0.0
    %91 = vmatprep.subr.mxu0 0.0
    %92 = vmatpush2.msra.mxu0 0.0
    %93 = vmatprep.subr.mxu0 0.0
    %94 = vmatpush2.msra.mxu0 0.0
    %95 = vmatprep.subr.mxu0 0.0
    %96 = vmatpush2.msra.mxu0 0.0
    %97 = vmatprep.subr.mxu0 0.0
    %98 = vmatpush2.msra.mxu0 0.0
    %99 = vmatprep.subr.mxu0 0.0
    %100 = vmatpush2.msra.mxu0 0.0
    %101 = vmatprep.subr.mxu0 0.0
    %102 = vmatpush2.msra.mxu0 0.0
    %103 = vmatprep.subr.mxu0 0.0
    %104 = vmatpush2.msra.mxu0 0.0
    %105 = vmatprep.subr.mxu0 0.0
    %106 = vmatpush2.msra.mxu0 0.0
    %107 = vmatprep.subr.mxu0 0.0
    %108 = vmatpush2.msra.mxu0 0.0
    %109 = vmatprep.subr.mxu0 0.0
    %110 = vmatpush2.msra.mxu0 0.0
    %111 = vmatprep.subr.mxu0 0.0
    %112 = vmatpush2.msra.mxu0 0.0
    %113 = vmatprep.subr.mxu0 0.0
    %114 = vmatpush2.msra.mxu0 0.0
    %115 = vmatprep.mubr.f32.mxu0 0.0
    %116 = vmatmul.mubr.f32.gmra.mxu0 %v49
    %v117 = vpop.f32.mrf.mxu0
    %v118 = vadd.f32 0.0, %v117
    %v119 = vpop.f32.mrf.mxu0
    %v120 = vadd.f32 0.0, %v119
    %121 = vdwg.mxu0
    %v122 = vand.u32 2147483647, %v38
    %v123 = vadd.f32 %v122, 1e-08
    %v124 = vlog2.pop %v123
    %v125 = vmul.f32 %v124, 0.6931472
    %v127 = vsel %vm47, %v125, 0
    %129 = vmatprep.subr.mxu0 0.0
    %130 = vmatpush1.msra.mxu0 0.0
    %131 = vmatprep.subr.mxu0 0.0
    %132 = vmatpush1.msra.mxu0 0.0
    %133 = vmatprep.subr.mxu0 0.0
    %134 = vmatpush1.msra.mxu0 0.0
    %135 = vmatprep.subr.mxu0 0.0
    %136 = vmatpush1.msra.mxu0 0.0
    %137 = vmatprep.subr.mxu0 0.0
    %138 = vmatpush1.msra.mxu0 0.0
    %139 = vmatprep.subr.mxu0 0.0
    %140 = vmatpush1.msra.mxu0 0.0
    %141 = vmatprep.subr.mxu0 0.0
    %142 = vmatpush1.msra.mxu0 0.0
    %143 = vmatprep.subr.mxu0 0.0
    %144 = vmatpush1.msra.mxu0 0.0
    %145 = vmatprep.subr.mxu0 0.0
    %146 = vmatpush1.msra.mxu0 0.0
    %147 = vmatprep.subr.mxu0 0.0
    %148 = vmatpush1.msra.mxu0 0.0
    %149 = vmatprep.subr.mxu0 0.0
    %150 = vmatpush1.msra.mxu0 0.0
    %151 = vmatprep.subr.mxu0 0.0
    %152 = vmatpush1.msra.mxu0 0.0
    %153 = vmatprep.subr.mxu0 0.0
    %154 = vmatpush1.msra.mxu0 %v46
    %155 = vmatprep.subr.mxu0 0.0
    %156 = vmatpush1.msra.mxu0 %v44
    %157 = vmatprep.subr.mxu0 0.0
    %158 = vmatpush1.msra.mxu0 %v42
    %159 = vmatprep.subr.mxu0 0.0
    %160 = vmatpush1.msra.mxu0 %v40
    %161 = vmatprep.subr.mxu0 0.0
    %162 = vmatpush2.msra.mxu0 0.0
    %163 = vmatprep.subr.mxu0 0.0
    %164 = vmatpush2.msra.mxu0 0.0
    %165 = vmatprep.subr.mxu0 0.0
    %166 = vmatpush2.msra.mxu0 0.0
    %167 = vmatprep.subr.mxu0 0.0
    %168 = vmatpush2.msra.mxu0 0.0
    %169 = vmatprep.subr.mxu0 0.0
    %170 = vmatpush2.msra.mxu0 0.0
    %171 = vmatprep.subr.mxu0 0.0
    %172 = vmatpush2.msra.mxu0 0.0
    %173 = vmatprep.subr.mxu0 0.0
    %174 = vmatpush2.msra.mxu0 0.0
    %175 = vmatprep.subr.mxu0 0.0
    %176 = vmatpush2.msra.mxu0 0.0
    %177 = vmatprep.subr.mxu0 0.0
    %178 = vmatpush2.msra.mxu0 0.0
    %179 = vmatprep.subr.mxu0 0.0
    %180 = vmatpush2.msra.mxu0 0.0
    %181 = vmatprep.subr.mxu0 0.0
    %182 = vmatpush2.msra.mxu0 0.0
    %183 = vmatprep.subr.mxu0 0.0
    %184 = vmatpush2.msra.mxu0 0.0
    %185 = vmatprep.subr.mxu0 0.0
    %186 = vmatpush2.msra.mxu0 0.0
    %187 = vmatprep.subr.mxu0 0.0
    %188 = vmatpush2.msra.mxu0 0.0
    %189 = vmatprep.subr.mxu0 0.0
    %190 = vmatpush2.msra.mxu0 0.0
    %191 = vmatprep.subr.mxu0 0.0
    %192 = vmatpush2.msra.mxu0 0.0
    %193 = vmatprep.mubr.f32.mxu0 0.0
    %194 = vmatmul.mubr.f32.gmra.mxu0 %v127
    %v195 = vpop.f32.mrf.mxu0
    %v196 = vadd.f32 0.0, %v195
    %v197 = vpop.f32.mrf.mxu0
    %198 = vdwg.mxu0
    %v199 = vxor.u32 %v118, 2147483648
    %v200 = vmul.f32 %v199, 1.442695
    %v201 = vpow.pop %v200
    %v202 = vadd.f32 %v201, 1.0
    %v203 = vrcp.pop %v202
    %v204 = vmul.f32 1.0, %v203
    %v205 = vmul.f32 %v196, 1.442695
    %v206 = vpow.pop %v205
    %v207 = vsub.f32 %v120, %v206
    %v208 = vmul.f32 %v204, %v207
    %v209 = vadd.f32 %v206, %v208
    %210 = vst [vmem:[#allocation7] sm:$0xff] %v209
    // Predicated region
    $region18: #{tpu_custom_call.1} parent=1 // pred_check
      _
    $region19: #{tpu_custom_call.1} parent=1 // pred_check_branch
      %212 = sbr.rel (0) target = $region21
    $region20: #{tpu_custom_call.1} parent=1 // pred_region
      %s214 = ssub.s32 128, 128
      %215 = vsyncadd [#allocation4], %s214
      %s217 = sshll.u32 [#allocation7], 4
      %s218 = int_to_ptr.vmem [resolvable:$true] %s217
      %220 = dma.vmem_to_hbm [thread:$0]  %s218, 128, %s2, [#allocation4]
    $region21: #{tpu_custom_call.1} parent=1 // pred_fallthru
      _
    // Predicated region
    $region22: #{tpu_custom_call.1} parent=1 // pred_check
      _
    $region23: #{tpu_custom_call.1} parent=1 // pred_check_branch
      %222 = sbr.rel (0) target = $region25
    $region24: #{tpu_custom_call.1} parent=1 // pred_region
      %223 = dma.done [#allocation4], 128
    $region25: #{tpu_custom_call.1} parent=1 // pred_fallthru
      _
    %224 = vsyncpa [#allocation3], 1
    %225 = vsyncpa [#allocation6], 1
    %226 = vsyncpa [#allocation4], 1

// kernel: tpu_custom_call.1
$region0: #{tpu_custom_call.1}
  #allocation0 [shape = 'u32[]', space=smem, size = 0x4, offset = 0x4, fixed_abs, tag = 'smem constant byte address 0x4 - core index']
  #allocation1 [shape = 'u32[144,128]{1,0:T(1,128)}', space=vmem, size = 0x12000, scoped, tag = 'internal scratch']
  %s0 = inlined_call_operand.hbm [shape: f32[8,32], index: 0, kind: input, shape index: {}]
  %s1 = inlined_call_operand.hbm [shape: f32[32,256], index: 1, kind: input, shape index: {}]
  %s2 = inlined_call_operand.hbm [shape: f32[8,128], index: 2, kind: output, shape index: {}]
  %s3 = sld [smem:[#allocation0]]
  $region26: #{tpu_custom_call.1} parent=0
    _
  %s5 = ssub.s32 1, %s3
  %s6 = scalar_select 0, %s5, %s3
  $region1: #{tpu_custom_call.1} parent=0
    #allocation2 [shape = 'u8[4096]{0}', space=vmem, size = 0x1000, scoped, tag = 'input window, operand 0, single buffered']
    #allocation3 [shape = 's32[1]{0}', space=sflag, size = 0x4, scoped, tag = 'scoped memory for tpu_custom_call.1']
    #allocation4 [shape = 's32[1]{0}', space=sflag, size = 0x4, scoped, tag = 'scoped memory for tpu_custom_call.1']
    #allocation5 [shape = 'u8[32768]{0}', space=vmem, size = 0x8000, scoped, tag = 'input window, operand 1, single buffered']
    #allocation6 [shape = 's32[1]{0}', space=sflag, size = 0x4, scoped, tag = 'scoped memory for tpu_custom_call.1']
    #allocation7 [shape = 'u8[4096]{0}', space=vmem, size = 0x1000, scoped, tag = 'output window, operand 0, single buffered']
    %7 = vsyncpa [#allocation3], 0
    %8 = vsyncpa [#allocation6], 0
    %9 = vsyncpa [#allocation4], 0
    // Predicated region
    $region2: #{tpu_custom_call.1} parent=1 // pred_check
      _
    $region3: #{tpu_custom_call.1} parent=1 // pred_check_branch
      %11 = sbr.rel (0) target = $region5
    $region4: #{tpu_custom_call.1} parent=1 // pred_region
      %s13 = ssub.s32 128, 128
      %14 = vsyncadd [#allocation3], %s13
      %s16 = sshll.u32 [#allocation2], 4
      %s17 = int_to_ptr.vmem [resolvable:$true] %s16
      %19 = dma.hbm_to_vmem [thread:$0]  %s0, 128, %s17, [#allocation3]
    $region5: #{tpu_custom_call.1} parent=1 // pred_fallthru
      _
    // Predicated region
    $region6: #{tpu_custom_call.1} parent=1 // pred_check
      _
    $region7: #{tpu_custom_call.1} parent=1 // pred_check_branch
      %21 = sbr.rel (0) target = $region9
    $region8: #{tpu_custom_call.1} parent=1 // pred_region
      %s23 = ssub.s32 1024, 1024
      %24 = vsyncadd [#allocation6], %s23
      %s25 = sshll.u32 [#allocation5], 4
      %s26 = int_to_ptr.vmem [resolvable:$true] %s25
      %31 = dma.hbm_to_vmem [thread:$0]  %s1, 1024, %s26, [#allocation6], 256, 256, 16
    $region9: #{tpu_custom_call.1} parent=1 // pred_fallthru
      _
    // Predicated region
    $region10: #{tpu_custom_call.1} parent=1 // pred_check
      _
    $region11: #{tpu_custom_call.1} parent=1 // pred_check_branch
      %33 = sbr.rel (0) target = $region13
    $region12: #{tpu_custom_call.1} parent=1 // pred_region
      %34 = dma.done [#allocation3], 128
    $region13: #{tpu_custom_call.1} parent=1 // pred_fallthru
      _
    // Predicated region
    $region14: #{tpu_custom_call.1} parent=1 // pred_check
      _
    $region15: #{tpu_custom_call.1} parent=1 // pred_check_branch
      %36 = sbr.rel (0) target = $region17
    $region16: #{tpu_custom_call.1} parent=1 // pred_region
      %37 = dma.done [#allocation6], 1024
    $region17: #{tpu_custom_call.1} parent=1 // pred_fallthru
      _
    %v38 = vld [vmem:[#allocation2] sm:$0xff]
    %v39 = vld [vmem:[#allocation5] sm:$0xff]
    %v40 = vld [vmem:[#allocation5 + $0x8] sm:$0xff]
    %v41 = vld [vmem:[#allocation5 + $0x10] sm:$0xff]
    %v42 = vld [vmem:[#allocation5 + $0x18] sm:$0xff]
    %v43 = vld [vmem:[#allocation5 + $0x20] sm:$0xff]
    %v44 = vld [vmem:[#allocation5 + $0x28] sm:$0xff]
    %v45 = vld [vmem:[#allocation5 + $0x30] sm:$0xff]
    %v46 = vld [vmem:[#allocation5 + $0x38] sm:$0xff]
    %vm47 = vcmask 261120
    %v49 = vsel %vm47, %v38, 0
    %51 = vmatprep.subr.mxu0 0.0
    %52 = vmatpush1.msra.mxu0 0.0
    %53 = vmatprep.subr.mxu0 0.0
    %54 = vmatpush1.msra.mxu0 0.0
    %55 = vmatprep.subr.mxu0 0.0
    %56 = vmatpush1.msra.mxu0 0.0
    %57 = vmatprep.subr.mxu0 0.0
    %58 = vmatpush1.msra.mxu0 0.0
    %59 = vmatprep.subr.mxu0 0.0
    %60 = vmatpush1.msra.mxu0 0.0
    %61 = vmatprep.subr.mxu0 0.0
    %62 = vmatpush1.msra.mxu0 0.0
    %63 = vmatprep.subr.mxu0 0.0
    %64 = vmatpush1.msra.mxu0 0.0
    %65 = vmatprep.subr.mxu0 0.0
    %66 = vmatpush1.msra.mxu0 0.0
    %67 = vmatprep.subr.mxu0 0.0
    %68 = vmatpush1.msra.mxu0 0.0
    %69 = vmatprep.subr.mxu0 0.0
    %70 = vmatpush1.msra.mxu0 0.0
    %71 = vmatprep.subr.mxu0 0.0
    %72 = vmatpush1.msra.mxu0 0.0
    %73 = vmatprep.subr.mxu0 0.0
    %74 = vmatpush1.msra.mxu0 0.0
    %75 = vmatprep.subr.mxu0 %v46
    %76 = vmatpush1.msra.mxu0 %v45
    %77 = vmatprep.subr.mxu0 %v44
    %78 = vmatpush1.msra.mxu0 %v43
    %79 = vmatprep.subr.mxu0 %v42
    %80 = vmatpush1.msra.mxu0 %v41
    %81 = vmatprep.subr.mxu0 %v40
    %82 = vmatpush1.msra.mxu0 %v39
    %83 = vmatprep.subr.mxu0 0.0
    %84 = vmatpush2.msra.mxu0 0.0
    %85 = vmatprep.subr.mxu0 0.0
    %86 = vmatpush2.msra.mxu0 0.0
    %87 = vmatprep.subr.mxu0 0.0
    %88 = vmatpush2.msra.mxu0 0.0
    %89 = vmatprep.subr.mxu0 0.0
    %90 = vmatpush2.msra.mxu0 0.0
    %91 = vmatprep.subr.mxu0 0.0
    %92 = vmatpush2.msra.mxu0 0.0
    %93 = vmatprep.subr.mxu0 0.0
    %94 = vmatpush2.msra.mxu0 0.0
    %95 = vmatprep.subr.mxu0 0.0
    %96 = vmatpush2.msra.mxu0 0.0
    %97 = vmatprep.subr.mxu0 0.0
    %98 = vmatpush2.msra.mxu0 0.0
    %99 = vmatprep.subr.mxu0 0.0
    %100 = vmatpush2.msra.mxu0 0.0
    %101 = vmatprep.subr.mxu0 0.0
    %102 = vmatpush2.msra.mxu0 0.0
    %103 = vmatprep.subr.mxu0 0.0
    %104 = vmatpush2.msra.mxu0 0.0
    %105 = vmatprep.subr.mxu0 0.0
    %106 = vmatpush2.msra.mxu0 0.0
    %107 = vmatprep.subr.mxu0 0.0
    %108 = vmatpush2.msra.mxu0 0.0
    %109 = vmatprep.subr.mxu0 0.0
    %110 = vmatpush2.msra.mxu0 0.0
    %111 = vmatprep.subr.mxu0 0.0
    %112 = vmatpush2.msra.mxu0 0.0
    %113 = vmatprep.subr.mxu0 0.0
    %114 = vmatpush2.msra.mxu0 0.0
    %115 = vmatprep.mubr.f32.mxu0 0.0
    %116 = vmatmul.mubr.f32.gmra.mxu0 %v49
    %v117 = vpop.f32.mrf.mxu0
    %v118 = vadd.f32 0.0, %v117
    %v119 = vpop.f32.mrf.mxu0
    %v120 = vadd.f32 0.0, %v119
    %121 = vdwg.mxu0
    %v122 = vand.u32 2147483647, %v38
    %v123 = vadd.f32 %v122, 1e-08
    %v124 = vlog2.pop %v123
    %v125 = vmul.f32 %v124, 0.6931472
    %v127 = vsel %vm47, %v125, 0
    %129 = vmatprep.subr.mxu0 0.0
    %130 = vmatpush1.msra.mxu0 0.0
    %131 = vmatprep.subr.mxu0 0.0
    %132 = vmatpush1.msra.mxu0 0.0
    %133 = vmatprep.subr.mxu0 0.0
    %134 = vmatpush1.msra.mxu0 0.0
    %135 = vmatprep.subr.mxu0 0.0
    %136 = vmatpush1.msra.mxu0 0.0
    %137 = vmatprep.subr.mxu0 0.0
    %138 = vmatpush1.msra.mxu0 0.0
    %139 = vmatprep.subr.mxu0 0.0
    %140 = vmatpush1.msra.mxu0 0.0
    %141 = vmatprep.subr.mxu0 0.0
    %142 = vmatpush1.msra.mxu0 0.0
    %143 = vmatprep.subr.mxu0 0.0
    %144 = vmatpush1.msra.mxu0 0.0
    %145 = vmatprep.subr.mxu0 0.0
    %146 = vmatpush1.msra.mxu0 0.0
    %147 = vmatprep.subr.mxu0 0.0
    %148 = vmatpush1.msra.mxu0 0.0
    %149 = vmatprep.subr.mxu0 0.0
    %150 = vmatpush1.msra.mxu0 0.0
    %151 = vmatprep.subr.mxu0 0.0
    %152 = vmatpush1.msra.mxu0 0.0
    %153 = vmatprep.subr.mxu0 0.0
    %154 = vmatpush1.msra.mxu0 %v46
    %155 = vmatprep.subr.mxu0 0.0
    %156 = vmatpush1.msra.mxu0 %v44
    %157 = vmatprep.subr.mxu0 0.0
    %158 = vmatpush1.msra.mxu0 %v42
    %159 = vmatprep.subr.mxu0 0.0
    %160 = vmatpush1.msra.mxu0 %v40
    %161 = vmatprep.subr.mxu0 0.0
    %162 = vmatpush2.msra.mxu0 0.0
    %163 = vmatprep.subr.mxu0 0.0
    %164 = vmatpush2.msra.mxu0 0.0
    %165 = vmatprep.subr.mxu0 0.0
    %166 = vmatpush2.msra.mxu0 0.0
    %167 = vmatprep.subr.mxu0 0.0
    %168 = vmatpush2.msra.mxu0 0.0
    %169 = vmatprep.subr.mxu0 0.0
    %170 = vmatpush2.msra.mxu0 0.0
    %171 = vmatprep.subr.mxu0 0.0
    %172 = vmatpush2.msra.mxu0 0.0
    %173 = vmatprep.subr.mxu0 0.0
    %174 = vmatpush2.msra.mxu0 0.0
    %175 = vmatprep.subr.mxu0 0.0
    %176 = vmatpush2.msra.mxu0 0.0
    %177 = vmatprep.subr.mxu0 0.0
    %178 = vmatpush2.msra.mxu0 0.0
    %179 = vmatprep.subr.mxu0 0.0
    %180 = vmatpush2.msra.mxu0 0.0
    %181 = vmatprep.subr.mxu0 0.0
    %182 = vmatpush2.msra.mxu0 0.0
    %183 = vmatprep.subr.mxu0 0.0
    %184 = vmatpush2.msra.mxu0 0.0
    %185 = vmatprep.subr.mxu0 0.0
    %186 = vmatpush2.msra.mxu0 0.0
    %187 = vmatprep.subr.mxu0 0.0
    %188 = vmatpush2.msra.mxu0 0.0
    %189 = vmatprep.subr.mxu0 0.0
    %190 = vmatpush2.msra.mxu0 0.0
    %191 = vmatprep.subr.mxu0 0.0
    %192 = vmatpush2.msra.mxu0 0.0
    %193 = vmatprep.mubr.f32.mxu0 0.0
    %194 = vmatmul.mubr.f32.gmra.mxu0 %v127
    %v195 = vpop.f32.mrf.mxu0
    %v196 = vadd.f32 0.0, %v195
    %v197 = vpop.f32.mrf.mxu0
    %198 = vdwg.mxu0
    %v199 = vxor.u32 %v118, 2147483648
    %v200 = vmul.f32 %v199, 1.442695
    %v201 = vpow.pop %v200
    %v202 = vadd.f32 %v201, 1.0
    %v203 = vrcp.pop %v202
    %v204 = vmul.f32 1.0, %v203
    %v205 = vmul.f32 %v196, 1.442695
    %v206 = vpow.pop %v205
    %v207 = vsub.f32 %v120, %v206
    %v208 = vmul.f32 %v204, %v207
    %v209 = vadd.f32 %v206, %v208
    %210 = vst [vmem:[#allocation7] sm:$0xff] %v209
    // Predicated region
    $region18: #{tpu_custom_call.1} parent=1 // pred_check
      _
    $region19: #{tpu_custom_call.1} parent=1 // pred_check_branch
      %212 = sbr.rel (0) target = $region21
    $region20: #{tpu_custom_call.1} parent=1 // pred_region
      %s214 = ssub.s32 128, 128
      %215 = vsyncadd [#allocation4], %s214
      %s217 = sshll.u32 [#allocation7], 4
      %s218 = int_to_ptr.vmem [resolvable:$true] %s217
      %220 = dma.vmem_to_hbm [thread:$0]  %s218, 128, %s2, [#allocation4]
    $region21: #{tpu_custom_call.1} parent=1 // pred_fallthru
      _
    // Predicated region
    $region22: #{tpu_custom_call.1} parent=1 // pred_check
      _
    $region23: #{tpu_custom_call.1} parent=1 // pred_check_branch
      %222 = sbr.rel (0) target = $region25
    $region24: #{tpu_custom_call.1} parent=1 // pred_region
      %223 = dma.done [#allocation4], 128
    $region25: #{tpu_custom_call.1} parent=1 // pred_fallthru
      _
    %224 = vsyncpa [#allocation3], 1
    %225 = vsyncpa [#allocation6], 1
    %226 = vsyncpa [#allocation4], 1

</llo_original>
